<compile_context>
chip_gen: v7x
topology: tpu7x:2x2x1
jax: 0.10.0
libtpu: 0.0.40
codegen_flags: <defaults>
</compile_context>

<pallas_src>
import jax
import jax.numpy as jnp
from jax.experimental import pallas as pl
from jax.experimental.pallas import tpu as pltpu

LANE = 128        # vreg lane width
TILE_ROWS = 512   # 512 x 128 f32 = 256 KiB per tile buffer


def _affine_kernel(wb_ref, x_ref, o_ref):
    # wb_ref: SMEM f32[2] = (weight, bias); x_ref/o_ref: lane-dense VMEM tiles.
    w = wb_ref[0]
    b = wb_ref[1]
    o_ref[...] = x_ref[...] * w + b


def _affine_small(x2d, wb):
    """Single full-array block: x2d is [1, n] (lane-dense)."""
    return pl.pallas_call(
        _affine_kernel,
        out_shape=jax.ShapeDtypeStruct(x2d.shape, x2d.dtype),
        in_specs=[
            pl.BlockSpec(memory_space=pltpu.SMEM),   # packed (w, b)
            pl.BlockSpec(memory_space=pltpu.VMEM),   # x, whole array
        ],
        out_specs=pl.BlockSpec(memory_space=pltpu.VMEM),
    )(wb, x2d)


def _affine_tiled(x2d, wb):
    """Gridded path: x2d is [rows, 128] with rows % TILE_ROWS == 0."""
    rows = x2d.shape[0]
    return pl.pallas_call(
        _affine_kernel,
        out_shape=jax.ShapeDtypeStruct(x2d.shape, x2d.dtype),
        grid=(pl.cdiv(rows, TILE_ROWS),),
        in_specs=[
            pl.BlockSpec(memory_space=pltpu.SMEM),            # packed (w, b)
            pl.BlockSpec((TILE_ROWS, LANE), lambda i: (i, 0)),  # x tile
        ],
        out_specs=pl.BlockSpec((TILE_ROWS, LANE), lambda i: (i, 0)),
        compiler_params=pltpu.CompilerParams(
            dimension_semantics=("parallel",)),
    )(wb, x2d)


def linear_1x1(x, weight, bias):
    """x: [..., 1] f32; weight: [1, 1] f32; bias: [1] f32 -> same shape as x."""
    assert x.dtype == jnp.float32, "pass f32 inputs (no hot-path casts)"
    orig_shape = x.shape
    assert orig_shape[-1] == 1, "Linear(1, 1) expects in_features == 1"
    n = x.size

    # Single packed f32[2] scalar param in SMEM (avoids 2-D SMEM padding).
    wb = jnp.stack([weight.reshape(()), bias.reshape(())]).astype(jnp.float32)

    flat = x.reshape(-1)
    tile_elems = TILE_ROWS * LANE
    if n < tile_elems:
        # Small: one lane-dense [1, n] block, no grid, no padding.
        y = _affine_small(flat.reshape(1, n), wb)
        return y.reshape(orig_shape)

    # Large: pad to a whole number of (TILE_ROWS, LANE) tiles, run gridded
    # pipelined kernel, then strip the padding.
    n_pad = ((n + tile_elems - 1) // tile_elems) * tile_elems
    if n_pad != n:
        flat = jnp.pad(flat, (0, n_pad - n))
    y2d = _affine_tiled(flat.reshape(n_pad // LANE, LANE), wb)
    return y2d.reshape(-1)[:n].reshape(orig_shape)


if __name__ == "__main__":
    key = jax.random.PRNGKey(0)
    kx, kw, kb, kx2 = jax.random.split(key, 4)

    # Deterministic params, mimicking nn.Linear(1,1)'s uniform(-1, 1) init.
    weight = jax.random.uniform(kw, (1, 1), minval=-1.0, maxval=1.0,
                                dtype=jnp.float32)
    bias = jax.random.uniform(kb, (1,), minval=-1.0, maxval=1.0,
                              dtype=jnp.float32)

    # Small-path check (matches the module's natural [B, 1] input).
    B = 8
    x = jax.random.normal(kx, (B, 1), dtype=jnp.float32)
    y = linear_1x1(x, weight, bias)
    jax.block_until_ready(y)
    y_ref = x @ weight.T + bias
    assert y.shape == (B, 1)
    assert jnp.allclose(y, y_ref, atol=1e-6, rtol=1e-6)

    # Tiled-path check (exercises the gridded, lane-dense, padded route).
    B2 = TILE_ROWS * LANE + 777
    x2 = jax.random.normal(kx2, (B2, 1), dtype=jnp.float32)
    y2 = linear_1x1(x2, weight, bias)
    jax.block_until_ready(y2)
    y2_ref = x2 @ weight.T + bias
    assert y2.shape == (B2, 1)
    assert jnp.allclose(y2, y2_ref, atol=1e-6, rtol=1e-6)

    print("KERNEL_OK")
</pallas_src>

<mosaic_0001>
module attributes {stable_mosaic.version = 11 : i64} {
  func.func @_affine_kernel(%arg0: memref<2xf32, #tpu.memory_space<smem>>, %arg1: memref<1x8xf32, #tpu.memory_space<vmem>>, %arg2: memref<1x8xf32, #tpu.memory_space<vmem>>) attributes {dimension_semantics = [], scalar_prefetch = 0 : i64, scratch_operands = 0 : i64, tpu.core_type = #tpu.core_type<tc>} {
    %c0 = arith.constant 0 : index
    %0 = memref.load %arg0[%c0] : memref<2xf32, #tpu.memory_space<smem>>
    %c1 = arith.constant 1 : index
    %1 = memref.load %arg0[%c1] : memref<2xf32, #tpu.memory_space<smem>>
    %c0_0 = arith.constant 0 : index
    %c0_1 = arith.constant 0 : index
    %2 = vector.load %arg1[%c0_0, %c0_1] : memref<1x8xf32, #tpu.memory_space<vmem>>, vector<1x8xf32>
    %3 = vector.broadcast %0 : f32 to vector<1x8xf32>
    %4 = arith.mulf %2, %3 : vector<1x8xf32>
    %5 = vector.broadcast %1 : f32 to vector<1x8xf32>
    %6 = arith.addf %4, %5 : vector<1x8xf32>
    %c0_2 = arith.constant 0 : index
    %c0_3 = arith.constant 0 : index
    %7 = vector.load %arg2[%c0_2, %c0_3] : memref<1x8xf32, #tpu.memory_space<vmem>>, vector<1x8xf32>
    tpu.vector_store %arg2[%c0_2, %c0_3], %6 {strides = array<i32>} : memref<1x8xf32, #tpu.memory_space<vmem>>, vector<1x8xf32>,
    return
  }
}

</mosaic_0001>

<llo_original>
// kernel: tpu_custom_call.1
$region0: #{tpu_custom_call.1}
  #allocation0 [shape = 'u32[]', space=smem, size = 0x4, offset = 0x4, fixed_abs, tag = 'smem constant byte address 0x4 - core index']
  #allocation1 [shape = 'u32[144,128]{1,0:T(1,128)}', space=vmem, size = 0x12000, scoped, tag = 'internal scratch']
  %s0 = inlined_call_operand.hbm [shape: f32[2], index: 0, kind: input, shape index: {}]
  %s1 = inlined_call_operand.vmem [shape: f32[1,8], index: 1, kind: input, shape index: {}]
  %s2 = inlined_call_operand.hbm [shape: f32[1,8], index: 2, kind: output, shape index: {}]
  %s3 = sld [smem:[#allocation0]]
  $region22: #{tpu_custom_call.1} parent=0
    _
  %s5 = ssub.s32 1, %s3
  %s6 = scalar_select 0, %s5, %s3
  $region1: #{tpu_custom_call.1} parent=0
    #allocation2 [shape = 'u8[512]{0}', space=smem, size = 0x200, scoped, tag = 'input window, operand 0, single buffered']
    #allocation3 [shape = 's32[1]{0}', space=sflag, size = 0x4, scoped, tag = 'scoped memory for tpu_custom_call.1']
    #allocation4 [shape = 's32[1]{0}', space=sflag, size = 0x4, scoped, tag = 'scoped memory for tpu_custom_call.1']
    #allocation5 [shape = 'u8[512]{0}', space=vmem, size = 0x400, scoped, tag = 'output window, operand 0, single buffered']
    %7 = vsyncpa [#allocation4], 0
    %8 = vsyncpa [#allocation3], 0
    // Predicated region
    $region2: #{tpu_custom_call.1} parent=1 // pred_check
      _
    $region3: #{tpu_custom_call.1} parent=1 // pred_check_branch
      %10 = sbr.rel (0) target = $region5
    $region4: #{tpu_custom_call.1} parent=1 // pred_region
      %s12 = ssub.s32 16, 16
      %13 = vsyncadd [#allocation4], %s12
      %16 = dma.hbm_to_smem %s0, 16, [#allocation2], [#allocation4]
    $region5: #{tpu_custom_call.1} parent=1 // pred_fallthru
      _
    // Predicated region
    $region6: #{tpu_custom_call.1} parent=1 // pred_check
      _
    $region7: #{tpu_custom_call.1} parent=1 // pred_check_branch
      %18 = sbr.rel (0) target = $region9
    $region8: #{tpu_custom_call.1} parent=1 // pred_region
      _
    $region9: #{tpu_custom_call.1} parent=1 // pred_fallthru
      _
    // Predicated region
    $region10: #{tpu_custom_call.1} parent=1 // pred_check
      _
    $region11: #{tpu_custom_call.1} parent=1 // pred_check_branch
      %20 = sbr.rel (0) target = $region13
    $region12: #{tpu_custom_call.1} parent=1 // pred_region
      %21 = dma.done [#allocation4], 16
    $region13: #{tpu_custom_call.1} parent=1 // pred_fallthru
      _
    %22 = sfence
    %s23 = sld [smem:[#allocation2]]
    %s24 = sld [smem:[#allocation2 + $0x1]]
    %v25 = vld [vmem:[%s1] sm:$0x1]
    %v26 = vstv %s23
    %v27 = vmul.f32 %v25, %v26
    %v28 = vstv %s24
    %v29 = vadd.f32 %v27, %v28
    %vm30 = vcmask 57344
    %31 = vst.msk [vmem:[#allocation5] sm:$0x1] %vm30, %v29
    // Predicated region
    $region14: #{tpu_custom_call.1} parent=1 // pred_check
      _
    $region15: #{tpu_custom_call.1} parent=1 // pred_check_branch
      %33 = sbr.rel (0) target = $region17
    $region16: #{tpu_custom_call.1} parent=1 // pred_region
      %s35 = ssub.s32 16, 16
      %36 = vsyncadd [#allocation3], %s35
      %s38 = sshll.u32 [#allocation5], 4
      %s39 = int_to_ptr.vmem [resolvable:$true] %s38
      %41 = dma.vmem_to_hbm [thread:$0]  %s39, 16, %s2, [#allocation3]
    $region17: #{tpu_custom_call.1} parent=1 // pred_fallthru
      _
    // Predicated region
    $region18: #{tpu_custom_call.1} parent=1 // pred_check
      _
    $region19: #{tpu_custom_call.1} parent=1 // pred_check_branch
      %43 = sbr.rel (0) target = $region21
    $region20: #{tpu_custom_call.1} parent=1 // pred_region
      %44 = dma.done [#allocation3], 16
    $region21: #{tpu_custom_call.1} parent=1 // pred_fallthru
      _
    %45 = vsyncpa [#allocation3], 1
    %46 = vsyncpa [#allocation4], 1

</llo_original>
